<compile_context>
chip_gen: v7x
topology: tpu7x:2x2x1
jax: 0.10.0
libtpu: 0.0.40
codegen_flags: <defaults>
</compile_context>

<pallas_src>
import functools

import jax
import jax.numpy as jnp
from jax.experimental import pallas as pl
from jax.experimental.pallas import tpu as pltpu


def _round_up(x, m):
    return ((x + m - 1) // m) * m


def _out_transition_kernel(w_ref, b_ref, x_ref, o_ref, *, cin, cout):
    # w_ref: (Cout, Cin) f32 in SMEM (scalar reads, DMA'd once)
    # b_ref: (Cout,)     f32 in SMEM
    # x_ref: (Cin, T)    VMEM tile, voxels lane-dense on the last axis
    # o_ref: (Cout, T)   VMEM tile, voxels lane-dense on the last axis
    for co in range(cout):
        # VPU broadcast-FMA: acc[:] = sum_ci w[co, ci] * x[ci, :] + b[co]
        acc = x_ref[0:1, :] * w_ref[co, 0]
        for ci in range(1, cin):
            acc = acc + x_ref[ci:ci + 1, :] * w_ref[co, ci]
        acc = acc + b_ref[co]
        # f32 accumulate; exp/reciprocal of the sigmoid go to the EUP slot,
        # which is otherwise idle in this DMA-bound kernel.
        o_ref[co:co + 1, :] = jax.nn.sigmoid(acc).astype(o_ref.dtype)


def output_transition(x, weight, bias, *, block_voxels=8192):
    """
    x:      (N, Cin, D, H, W)  float32   (NCDHW, same as PyTorch)
    weight: (Cout, Cin, 1, 1, 1)          (PyTorch Conv3d weight layout)
    bias:   (Cout,)
    returns (N, Cout, D, H, W) float32
    """
    N, Cin, D, H, W = x.shape
    Cout = weight.shape[0]
    S = D * H * W

    # Free reshapes only (contiguous trailing dims) -- no HBM transposes.
    x3 = x.reshape(N, Cin, S)
    w2d = weight.reshape(Cout, Cin).astype(jnp.float32)
    b1d = bias.astype(jnp.float32)

    # Large lane-dense voxel tile: multiple of 128, capped by the volume size.
    # Footprint per step: (Cin + Cout) * T * 4 B, double-buffered -> well under
    # even v7x's 64 MiB VMEM at the default T.
    T = min(block_voxels, _round_up(S, 128))
    num_tiles = pl.cdiv(S, T)

    kernel = functools.partial(_out_transition_kernel, cin=Cin, cout=Cout)

    out3 = pl.pallas_call(
        kernel,
        out_shape=jax.ShapeDtypeStruct((N, Cout, S), x.dtype),
        grid_spec=pltpu.PrefetchScalarGridSpec(
            num_scalar_prefetch=0,
            grid=(N, num_tiles),
            in_specs=[
                # Tiny grid-invariant params: live in SMEM, never compete with
                # the streaming x-tile DMAs for vector-load slots.
                pl.BlockSpec(memory_space=pltpu.MemorySpace.SMEM),  # weight
                pl.BlockSpec(memory_space=pltpu.MemorySpace.SMEM),  # bias
                # Streaming x tile: batch dim squeezed, voxels on lanes.
                pl.BlockSpec((None, Cin, T), lambda n, s: (n, 0, s)),
            ],
            out_specs=pl.BlockSpec((None, Cout, T), lambda n, s: (n, 0, s)),
        ),
        compiler_params=pltpu.CompilerParams(
            # Both grid axes are independent -> shard across 2 TCs on v7x.
            dimension_semantics=("parallel", "parallel"),
        ),
    )(w2d, b1d, x3)

    return out3.reshape(N, Cout, D, H, W)


def _reference(x, weight, bias):
    # Pure-JAX reference of the 1x1x1 conv + sigmoid for sanity checking.
    w2d = weight.reshape(weight.shape[0], weight.shape[1])
    y = jnp.einsum("ncdhw,oc->nodhw", x, w2d) + bias[None, :, None, None, None]
    return jax.nn.sigmoid(y)


if __name__ == "__main__":
    key = jax.random.PRNGKey(0)
    kx, kw, kb = jax.random.split(key, 3)

    # Small shapes: batch=2, inChans=4, outChans=2, spatial 8^3
    N, Cin, Cout, D, H, W = 2, 4, 2, 8, 8, 8

    x = jax.random.normal(kx, (N, Cin, D, H, W), dtype=jnp.float32)
    # Deterministic parameter init (synthetic; mimics small-uniform Conv3d init).
    bound = 1.0 / (Cin ** 0.5)
    weight = jax.random.uniform(kw, (Cout, Cin, 1, 1, 1),
                                minval=-bound, maxval=bound, dtype=jnp.float32)
    bias = jax.random.uniform(kb, (Cout,),
                              minval=-bound, maxval=bound, dtype=jnp.float32)

    y = output_transition(x, weight, bias)
    y = jax.block_until_ready(y)

    y_ref = _reference(x, weight, bias)
    assert y.shape == (N, Cout, D, H, W)
    assert jnp.allclose(y, y_ref, atol=1e-5, rtol=1e-5)

    print("KERNEL_OK")
</pallas_src>

<mosaic_0001>
module attributes {stable_mosaic.version = 11 : i64} {
  func.func @_out_transition_kernel(%arg0: i32, %arg1: i32, %arg2: memref<2x4xf32, #tpu.memory_space<smem>>, %arg3: memref<2xf32, #tpu.memory_space<smem>>, %arg4: memref<1x4x512xf32, #tpu.memory_space<vmem>>, %arg5: memref<1x2x512xf32, #tpu.memory_space<vmem>>) attributes {dimension_semantics = [#tpu.dimension_semantics<parallel>, #tpu.dimension_semantics<parallel>], iteration_bounds = array<i64: 2, 1>, scalar_prefetch = 0 : i64, scratch_operands = 0 : i64, tpu.core_type = #tpu.core_type<tc>, window_params = [{transform_indices = @transform_0, window_bounds = array<i64: 2, 4>}, {transform_indices = @transform_1, window_bounds = array<i64: 2>}, {transform_indices = @transform_2, window_bounds = array<i64: 1, 4, 512>}, {transform_indices = @transform_3, window_bounds = array<i64: 1, 2, 512>}]} {
    %c0 = arith.constant 0 : index
    %c0_0 = arith.constant 0 : index
    %c0_1 = arith.constant 0 : index
    %0 = vector.load %arg4[%c0, %c0_0, %c0_1] : memref<1x4x512xf32, #tpu.memory_space<vmem>>, vector<1x1x512xf32>
    %1 = vector.shape_cast %0 : vector<1x1x512xf32> to vector<1x512xf32>
    %c0_2 = arith.constant 0 : index
    %c0_3 = arith.constant 0 : index
    %2 = memref.load %arg2[%c0_2, %c0_3] : memref<2x4xf32, #tpu.memory_space<smem>>
    %3 = vector.broadcast %2 : f32 to vector<1x512xf32>
    %4 = arith.mulf %1, %3 : vector<1x512xf32>
    %c0_4 = arith.constant 0 : index
    %c1 = arith.constant 1 : index
    %c0_5 = arith.constant 0 : index
    %5 = vector.load %arg4[%c0_4, %c1, %c0_5] : memref<1x4x512xf32, #tpu.memory_space<vmem>>, vector<1x1x512xf32>
    %6 = vector.shape_cast %5 : vector<1x1x512xf32> to vector<1x512xf32>
    %c0_6 = arith.constant 0 : index
    %c1_7 = arith.constant 1 : index
    %7 = memref.load %arg2[%c0_6, %c1_7] : memref<2x4xf32, #tpu.memory_space<smem>>
    %8 = vector.broadcast %7 : f32 to vector<1x512xf32>
    %9 = arith.mulf %6, %8 : vector<1x512xf32>
    %10 = arith.addf %4, %9 : vector<1x512xf32>
    %c0_8 = arith.constant 0 : index
    %c2 = arith.constant 2 : index
    %c0_9 = arith.constant 0 : index
    %11 = vector.load %arg4[%c0_8, %c2, %c0_9] : memref<1x4x512xf32, #tpu.memory_space<vmem>>, vector<1x1x512xf32>
    %12 = vector.shape_cast %11 : vector<1x1x512xf32> to vector<1x512xf32>
    %c0_10 = arith.constant 0 : index
    %c2_11 = arith.constant 2 : index
    %13 = memref.load %arg2[%c0_10, %c2_11] : memref<2x4xf32, #tpu.memory_space<smem>>
    %14 = vector.broadcast %13 : f32 to vector<1x512xf32>
    %15 = arith.mulf %12, %14 : vector<1x512xf32>
    %16 = arith.addf %10, %15 : vector<1x512xf32>
    %c0_12 = arith.constant 0 : index
    %c3 = arith.constant 3 : index
    %c0_13 = arith.constant 0 : index
    %17 = vector.load %arg4[%c0_12, %c3, %c0_13] : memref<1x4x512xf32, #tpu.memory_space<vmem>>, vector<1x1x512xf32>
    %18 = vector.shape_cast %17 : vector<1x1x512xf32> to vector<1x512xf32>
    %c0_14 = arith.constant 0 : index
    %c3_15 = arith.constant 3 : index
    %19 = memref.load %arg2[%c0_14, %c3_15] : memref<2x4xf32, #tpu.memory_space<smem>>
    %20 = vector.broadcast %19 : f32 to vector<1x512xf32>
    %21 = arith.mulf %18, %20 : vector<1x512xf32>
    %22 = arith.addf %16, %21 : vector<1x512xf32>
    %c0_16 = arith.constant 0 : index
    %23 = memref.load %arg3[%c0_16] : memref<2xf32, #tpu.memory_space<smem>>
    %24 = vector.broadcast %23 : f32 to vector<1x512xf32>
    %25 = arith.addf %22, %24 : vector<1x512xf32>
    %26 = arith.negf %25 : vector<1x512xf32>
    %27 = math.exp %26 : vector<1x512xf32>
    %cst = arith.constant 1.000000e+00 : f32
    %28 = vector.broadcast %cst : f32 to vector<1x512xf32>
    %29 = arith.addf %28, %27 : vector<1x512xf32>
    %30 = arith.divf %28, %29 : vector<1x512xf32>
    %c0_17 = arith.constant 0 : index
    %c0_18 = arith.constant 0 : index
    %c0_19 = arith.constant 0 : index
    %31 = vector.load %arg5[%c0_17, %c0_18, %c0_19] : memref<1x2x512xf32, #tpu.memory_space<vmem>>, vector<1x1x512xf32>
    %32 = vector.shape_cast %31 : vector<1x1x512xf32> to vector<1x512xf32>
    %33 = vector.shape_cast %30 : vector<1x512xf32> to vector<1x1x512xf32>
    tpu.vector_store %arg5[%c0_17, %c0_18, %c0_19], %33 {strides = array<i32>} : memref<1x2x512xf32, #tpu.memory_space<vmem>>, vector<1x1x512xf32>,
    %c0_20 = arith.constant 0 : index
    %c0_21 = arith.constant 0 : index
    %c0_22 = arith.constant 0 : index
    %34 = vector.load %arg4[%c0_20, %c0_21, %c0_22] : memref<1x4x512xf32, #tpu.memory_space<vmem>>, vector<1x1x512xf32>
    %35 = vector.shape_cast %34 : vector<1x1x512xf32> to vector<1x512xf32>
    %c1_23 = arith.constant 1 : index
    %c0_24 = arith.constant 0 : index
    %36 = memref.load %arg2[%c1_23, %c0_24] : memref<2x4xf32, #tpu.memory_space<smem>>
    %37 = vector.broadcast %36 : f32 to vector<1x512xf32>
    %38 = arith.mulf %35, %37 : vector<1x512xf32>
    %c0_25 = arith.constant 0 : index
    %c1_26 = arith.constant 1 : index
    %c0_27 = arith.constant 0 : index
    %39 = vector.load %arg4[%c0_25, %c1_26, %c0_27] : memref<1x4x512xf32, #tpu.memory_space<vmem>>, vector<1x1x512xf32>
    %40 = vector.shape_cast %39 : vector<1x1x512xf32> to vector<1x512xf32>
    %c1_28 = arith.constant 1 : index
    %c1_29 = arith.constant 1 : index
    %41 = memref.load %arg2[%c1_28, %c1_29] : memref<2x4xf32, #tpu.memory_space<smem>>
    %42 = vector.broadcast %41 : f32 to vector<1x512xf32>
    %43 = arith.mulf %40, %42 : vector<1x512xf32>
    %44 = arith.addf %38, %43 : vector<1x512xf32>
    %c0_30 = arith.constant 0 : index
    %c2_31 = arith.constant 2 : index
    %c0_32 = arith.constant 0 : index
    %45 = vector.load %arg4[%c0_30, %c2_31, %c0_32] : memref<1x4x512xf32, #tpu.memory_space<vmem>>, vector<1x1x512xf32>
    %46 = vector.shape_cast %45 : vector<1x1x512xf32> to vector<1x512xf32>
    %c1_33 = arith.constant 1 : index
    %c2_34 = arith.constant 2 : index
    %47 = memref.load %arg2[%c1_33, %c2_34] : memref<2x4xf32, #tpu.memory_space<smem>>
    %48 = vector.broadcast %47 : f32 to vector<1x512xf32>
    %49 = arith.mulf %46, %48 : vector<1x512xf32>
    %50 = arith.addf %44, %49 : vector<1x512xf32>
    %c0_35 = arith.constant 0 : index
    %c3_36 = arith.constant 3 : index
    %c0_37 = arith.constant 0 : index
    %51 = vector.load %arg4[%c0_35, %c3_36, %c0_37] : memref<1x4x512xf32, #tpu.memory_space<vmem>>, vector<1x1x512xf32>
    %52 = vector.shape_cast %51 : vector<1x1x512xf32> to vector<1x512xf32>
    %c1_38 = arith.constant 1 : index
    %c3_39 = arith.constant 3 : index
    %53 = memref.load %arg2[%c1_38, %c3_39] : memref<2x4xf32, #tpu.memory_space<smem>>
    %54 = vector.broadcast %53 : f32 to vector<1x512xf32>
    %55 = arith.mulf %52, %54 : vector<1x512xf32>
    %56 = arith.addf %50, %55 : vector<1x512xf32>
    %c1_40 = arith.constant 1 : index
    %57 = memref.load %arg3[%c1_40] : memref<2xf32, #tpu.memory_space<smem>>
    %58 = vector.broadcast %57 : f32 to vector<1x512xf32>
    %59 = arith.addf %56, %58 : vector<1x512xf32>
    %60 = arith.negf %59 : vector<1x512xf32>
    %61 = math.exp %60 : vector<1x512xf32>
    %cst_41 = arith.constant 1.000000e+00 : f32
    %62 = vector.broadcast %cst_41 : f32 to vector<1x512xf32>
    %63 = arith.addf %62, %61 : vector<1x512xf32>
    %64 = arith.divf %62, %63 : vector<1x512xf32>
    %c0_42 = arith.constant 0 : index
    %c1_43 = arith.constant 1 : index
    %c0_44 = arith.constant 0 : index
    %65 = vector.load %arg5[%c0_42, %c1_43, %c0_44] : memref<1x2x512xf32, #tpu.memory_space<vmem>>, vector<1x1x512xf32>
    %66 = vector.shape_cast %65 : vector<1x1x512xf32> to vector<1x512xf32>
    %67 = vector.shape_cast %64 : vector<1x512xf32> to vector<1x1x512xf32>
    tpu.vector_store %arg5[%c0_42, %c1_43, %c0_44], %67 {strides = array<i32>} : memref<1x2x512xf32, #tpu.memory_space<vmem>>, vector<1x1x512xf32>,
    return
  }
  func.func @transform_0(%arg0: i32, %arg1: i32) -> (i32, i32) {
    %c0_i32 = arith.constant 0 : i32
    %c0_i32_0 = arith.constant 0 : i32
    %c0_i32_1 = arith.constant 0 : i32
    return %c0_i32, %c0_i32_0 : i32, i32
  }
  func.func @transform_1(%arg0: i32, %arg1: i32) -> i32 {
    %c0_i32 = arith.constant 0 : i32
    %c0_i32_0 = arith.constant 0 : i32
    return %c0_i32 : i32
  }
  func.func @transform_2(%arg0: i32, %arg1: i32) -> (i32, i32, i32) {
    %c0_i32 = arith.constant 0 : i32
    %c0_i32_0 = arith.constant 0 : i32
    return %arg0, %c0_i32, %arg1 : i32, i32, i32
  }
  func.func @transform_3(%arg0: i32, %arg1: i32) -> (i32, i32, i32) {
    %c0_i32 = arith.constant 0 : i32
    %c0_i32_0 = arith.constant 0 : i32
    return %arg0, %c0_i32, %arg1 : i32, i32, i32
  }
}

</mosaic_0001>

<llo_original>
// kernel: tpu_custom_call.1
$region0: #{tpu_custom_call.1}
  #allocation0 [shape = 'u32[]', space=smem, size = 0x4, offset = 0x4, fixed_abs, tag = 'smem constant byte address 0x4 - core index']
  #allocation1 [shape = 'u32[144,128]{1,0:T(1,128)}', space=vmem, size = 0x12000, scoped, tag = 'internal scratch']
  %s0 = inlined_call_operand.hbm [shape: f32[2,4], index: 0, kind: input, shape index: {}]
  %s1 = inlined_call_operand.vmem [shape: f32[2], index: 1, kind: input, shape index: {}]
  %s2 = inlined_call_operand.hbm [shape: f32[2,4,512], index: 2, kind: input, shape index: {}]
  %s3 = inlined_call_operand.hbm [shape: f32[2,2,512], index: 3, kind: output, shape index: {}]
  %s4 = sld [smem:[#allocation0]]
  $region57: #{tpu_custom_call.1} parent=0
    _
  %s6 = ssub.s32 1, %s4
  %s7 = scalar_select 0, %s6, %s4
  $region1: #{tpu_custom_call.1} parent=0
    #allocation2 [shape = 'u8[1024]{0}', space=smem, size = 0x400, scoped, tag = 'input window, operand 0, single buffered']
    #allocation3 [shape = 's32[2]{0}', space=sflag, size = 0x8, scoped, tag = 'scoped memory for tpu_custom_call.1']
    #allocation4 [shape = 's32[2]{0}', space=sflag, size = 0x8, scoped, tag = 'scoped memory for tpu_custom_call.1']
    #allocation5 [shape = 's32[2]{0}', space=sflag, size = 0x8, scoped, tag = 'scoped memory for tpu_custom_call.1']
    #allocation6 [shape = 's32[2]{0}', space=sflag, size = 0x8, scoped, tag = 'scoped memory for tpu_custom_call.1']
    #allocation7 [shape = 'u8[512]{0}', space=smem, size = 0x200, scoped, tag = 'input window, operand 1, single buffered']
    #allocation8 [shape = 'u8[16384]{0}', space=vmem, size = 0x4000, scoped, tag = 'input window, operand 2']
    #allocation9 [shape = 'u8[8192]{0}', space=vmem, size = 0x2000, scoped, tag = 'output window, operand 0']
    %8 = vsyncpa [#allocation5], 0
    %9 = vsyncpa [#allocation6], 0
    %10 = vsyncpa [#allocation3], 0
    %s11 = scalar_lea.sflag [#allocation3], 1
    %12 = vsyncpa %s11, 0
    %13 = vsyncpa [#allocation4], 0
    %s14 = scalar_lea.sflag [#allocation4], 1
    %15 = vsyncpa %s14, 0
    loop: start=0, step=1, limit=4
    $region2: #{tpu_custom_call.1} parent=1 // loop_pre_header
      _
    $region3: #{tpu_custom_call.1} parent=1 // loop_header
      %s17 = sphi 0, %s21
      %p18 = scmp.ge.s32.totalorder %s17, 4
      %s24 = sphi 0, %s36
      %s25 = sphi 0, %s32
      %s26 = sphi 0, %s24
      %s27 = sphi 0, %s25
      %s28 = sphi 0, %s26
      %s29 = sphi 0, %s27
      %s37 = sphi 0, %s37
      %s39 = sphi 0, %s37
      %s40 = sphi 0, %s39
      %s54 = sphi 0, %s40
      %s58 = sphi 0, %s58
      %s60 = sphi 0, %s58
      %s61 = sphi 0, %s60
      %s75 = sphi 0, %s61
      %s83 = sphi 0, %s85
      %s86 = sphi 0, %s83
      %s87 = sphi 0, %s86
      %s103 = sphi 0, %s87
      %s111 = sphi 0, %s113
      %s114 = sphi 0, %s111
      %s115 = sphi 0, %s114
      %s131 = sphi 0, %s115
    $region4: #{tpu_custom_call.1} parent=1 // loop_header_branch
      %20 = sbr.rel (%p18) target = $region8
    $region5: #{tpu_custom_call.1} parent=1 // loop_body
      %s22 = ssub.s32 %s17, 1
      %s23 = ssub.s32 %s17, 2
      %s30 = sadd.s32 1, %s25
      %p31 = scmp.ge.s32.totalorder %s30, 1
      %s32 = scalar_select %p31, 0, %s30
      %s33 = sadd.s32 1, %s24
      %s34 = scalar_select %p31, %s33, %s24
      %p35 = scmp.ge.s32.totalorder %s34, 2
      %s36 = scalar_select %p35, 0, %s34
      %s38 = sadd.s32 %s37, 1
      %p41 = scmp.eq.s32.totalorder %s17, 1
      %p42 = scmp.ne.s32.totalorder %s37, %s39
      %p43 = scmp.eq.s32.totalorder %s17, 0
      %p44 = por %p42, %p43
      %p45 = scmp.ne.s32.totalorder %s37, %s39
      %p46 = scmp.eq.s32.totalorder %s22, 1
      %p47 = por %p45, %p46
      %p48 = scmp.ne.s32.totalorder %s39, %s40
      %p49 = scmp.eq.s32.totalorder %s22, 0
      %p50 = por %p48, %p49
      %p51 = scmp.ne.s32.totalorder %s39, %s40
      %p52 = scmp.eq.s32.totalorder %s23, 1
      %p53 = por %p51, %p52
      %p55 = scmp.ne.s32.totalorder %s40, %s54
      %p56 = scmp.eq.s32.totalorder %s23, 0
      %p57 = por %p55, %p56
      %s59 = sadd.s32 %s58, 1
      %p62 = scmp.eq.s32.totalorder %s17, 1
      %p63 = scmp.ne.s32.totalorder %s58, %s60
      %p64 = scmp.eq.s32.totalorder %s17, 0
      %p65 = por %p63, %p64
      %p66 = scmp.ne.s32.totalorder %s58, %s60
      %p67 = scmp.eq.s32.totalorder %s22, 1
      %p68 = por %p66, %p67
      %p69 = scmp.ne.s32.totalorder %s60, %s61
      %p70 = scmp.eq.s32.totalorder %s22, 0
      %p71 = por %p69, %p70
      %p72 = scmp.ne.s32.totalorder %s60, %s61
      %p73 = scmp.eq.s32.totalorder %s23, 1
      %p74 = por %p72, %p73
      %p76 = scmp.ne.s32.totalorder %s61, %s75
      %p77 = scmp.eq.s32.totalorder %s23, 0
      %p78 = por %p76, %p77
      %s79 = ssub.s32 %s24, %s36
      %s80 = ssub.s32 %s25, %s32
      %s81 = sor.u32 %s79, %s80
      %p82 = scmp.eq.s32.totalorder %s81, 0
      %s84 = sadd.s32 %s83, 1
      %s85 = scalar_select %p82, %s83, %s84
      %p88 = pneg %p82
      %p89 = scmp.eq.s32.totalorder %s17, 1
      %p90 = por %p88, %p89
      %p91 = scmp.ne.s32.totalorder %s83, %s86
      %p92 = scmp.eq.s32.totalorder %s17, 0
      %p93 = por %p91, %p92
      %p94 = scmp.ne.s32.totalorder %s83, %s86
      %p95 = scmp.eq.s32.totalorder %s22, 1
      %p96 = por %p94, %p95
      %p97 = scmp.ne.s32.totalorder %s86, %s87
      %p98 = scmp.eq.s32.totalorder %s22, 0
      %p99 = por %p97, %p98
      %p100 = scmp.ne.s32.totalorder %s86, %s87
      %p101 = scmp.eq.s32.totalorder %s23, 1
      %p102 = por %p100, %p101
      %p104 = scmp.ne.s32.totalorder %s87, %s103
      %p105 = scmp.eq.s32.totalorder %s23, 0
      %p106 = por %p104, %p105
      %s107 = ssub.s32 %s24, %s36
      %s108 = ssub.s32 %s25, %s32
      %s109 = sor.u32 %s107, %s108
      %p110 = scmp.eq.s32.totalorder %s109, 0
      %s112 = sadd.s32 %s111, 1
      %s113 = scalar_select %p110, %s111, %s112
      %p116 = pneg %p110
      %p117 = scmp.eq.s32.totalorder %s17, 1
      %p118 = por %p116, %p117
      %p119 = scmp.ne.s32.totalorder %s111, %s114
      %p120 = scmp.eq.s32.totalorder %s17, 0
      %p121 = por %p119, %p120
      %p122 = scmp.ne.s32.totalorder %s111, %s114
      %p123 = scmp.eq.s32.totalorder %s22, 1
      %p124 = por %p122, %p123
      %p125 = scmp.ne.s32.totalorder %s114, %s115
      %p126 = scmp.eq.s32.totalorder %s22, 0
      %p127 = por %p125, %p126
      %p128 = scmp.ne.s32.totalorder %s114, %s115
      %p129 = scmp.eq.s32.totalorder %s23, 1
      %p130 = por %p128, %p129
      %p132 = scmp.ne.s32.totalorder %s115, %s131
      %p133 = scmp.eq.s32.totalorder %s23, 0
      %p134 = por %p132, %p133
      %p135 = scmp.le.s32.totalorder 1, %s17
      %p136 = scmp.lt.s32.totalorder %s17, 3
      %p137 = pnand %p135, %p136
      %p138 = pneg %p137
      // Predicated region
      $region9: #{tpu_custom_call.1} parent=5 // pred_check
        _
      $region10: #{tpu_custom_call.1} parent=5 // pred_check_branch
        %140 = sbr.rel (%p137) target = $region12
      $region11: #{tpu_custom_call.1} parent=5 // pred_region
        %s141 = ssub.s32 %s17, 1
        // Predicated region
        $region13: #{tpu_custom_call.1} parent=11 // pred_check
          %p142 = pneg %p50
        $region14: #{tpu_custom_call.1} parent=11 // pred_check_branch
          %144 = sbr.rel (%p142) target = $region16
        $region15: #{tpu_custom_call.1} parent=11 // pred_region
          %s146 = ssub.s32 32, 32
          %147 = vsyncadd [#allocation5], %s146
          %150 = dma.hbm_to_smem %s0, 32, [#allocation2], [#allocation5]
        $region16: #{tpu_custom_call.1} parent=11 // pred_fallthru
          _
        // Predicated region
        $region17: #{tpu_custom_call.1} parent=11 // pred_check
          %p151 = pneg %p71
        $region18: #{tpu_custom_call.1} parent=11 // pred_check_branch
          %153 = sbr.rel (%p151) target = $region20
        $region19: #{tpu_custom_call.1} parent=11 // pred_region
          %s155 = ssub.s32 16, 16
          %156 = vsyncadd [#allocation6], %s155
          %s158 = sshll.u32 %s1, 4
          %s159 = int_to_ptr.vmem [resolvable:$true] %s158
          %161 = dma.vmem_to_smem %s159, 16, [#allocation7], [#allocation6]
        $region20: #{tpu_custom_call.1} parent=11 // pred_fallthru
          _
      $region12: #{tpu_custom_call.1} parent=5 // pred_fallthru
        _
      %p162 = scmp.lt.s32.totalorder %s17, 2
      // Predicated region
      $region21: #{tpu_custom_call.1} parent=5 // pred_check
        %p163 = pneg %p162
      $region22: #{tpu_custom_call.1} parent=5 // pred_check_branch
        %165 = sbr.rel (%p163) target = $region24
      $region23: #{tpu_custom_call.1} parent=5 // pred_region
        // Predicated region
        $region25: #{tpu_custom_call.1} parent=23 // pred_check
          %p166 = pneg %p93
        $region26: #{tpu_custom_call.1} parent=23 // pred_check_branch
          %168 = sbr.rel (%p166) target = $region28
        $region27: #{tpu_custom_call.1} parent=23 // pred_region
          %s169 = sand.u32 %s83, 1
          %s170 = scalar_lea.sflag [#allocation3], %s169
          %s171 = sand.u32 %s83, 1
          %s172 = smul.addr %s171, 16
          %s173 = scalar_lea.vmem [#allocation8], %s172
          %s174 = smul.u32 4, %s25
          %s176 = ssub.s32 256, 256
          %177 = vsyncadd %s170, %s176
          %s178 = smul.addr %s24, 4
          %s179 = sadd.s32 %s174, %s178
          %s180 = smul.addr %s179, 64
          %s181 = scalar_lea.hbm %s2, %s180
          %s183 = sshll.u32 %s173, 4
          %s184 = int_to_ptr.vmem [resolvable:$true] %s183
          %186 = dma.hbm_to_vmem [thread:$0]  %s181, 256, %s184, %s170
        $region28: #{tpu_custom_call.1} parent=23 // pred_fallthru
          _
      $region24: #{tpu_custom_call.1} parent=5 // pred_fallthru
        _
      %p187 = scmp.le.s32.totalorder 1, %s17
      %p188 = scmp.lt.s32.totalorder %s17, 3
      %p189 = pnand %p187, %p188
      %p190 = pneg %p189
      // Predicated region
      $region29: #{tpu_custom_call.1} parent=5 // pred_check
        _
      $region30: #{tpu_custom_call.1} parent=5 // pred_check_branch
        %192 = sbr.rel (%p189) target = $region32
      $region31: #{tpu_custom_call.1} parent=5 // pred_region
        %s193 = ssub.s32 %s17, 1
        // Predicated region
        $region33: #{tpu_custom_call.1} parent=31 // pred_check
          %p194 = pneg %p50
        $region34: #{tpu_custom_call.1} parent=31 // pred_check_branch
          %196 = sbr.rel (%p194) target = $region36
        $region35: #{tpu_custom_call.1} parent=31 // pred_region
          %197 = dma.done [#allocation5], 32
        $region36: #{tpu_custom_call.1} parent=31 // pred_fallthru
          _
        // Predicated region
        $region37: #{tpu_custom_call.1} parent=31 // pred_check
          %p198 = pneg %p71
        $region38: #{tpu_custom_call.1} parent=31 // pred_check_branch
          %200 = sbr.rel (%p198) target = $region40
        $region39: #{tpu_custom_call.1} parent=31 // pred_region
          %201 = dma.done [#allocation6], 16
        $region40: #{tpu_custom_call.1} parent=31 // pred_fallthru
          _
        %s202 = sand.u32 %s86, 1
        %s203 = scalar_lea.sflag [#allocation3], %s202
        %s204 = sand.u32 %s86, 1
        %s205 = smul.addr %s204, 16
        %s206 = scalar_lea.vmem [#allocation8], %s205
        // Predicated region
        $region41: #{tpu_custom_call.1} parent=31 // pred_check
          %p207 = pneg %p99
        $region42: #{tpu_custom_call.1} parent=31 // pred_check_branch
          %209 = sbr.rel (%p207) target = $region44
        $region43: #{tpu_custom_call.1} parent=31 // pred_region
          %210 = dma.done %s203, 256
        $region44: #{tpu_custom_call.1} parent=31 // pred_fallthru
          _
        %211 = sfence
        %p212 = pneg %p50
        %p213 = pneg %p47
        %p214 = pneg %p71
        %p215 = pneg %p68
        %s216 = sand.u32 %s86, 1
        %s217 = scalar_lea.sflag [#allocation3], %s216
        %s218 = sand.u32 %s86, 1
        %s219 = smul.addr %s218, 16
        %s220 = scalar_lea.vmem [#allocation8], %s219
        %p221 = pneg %p99
        %p222 = pneg %p96
        %p223 = pneg %p127
        %p224 = pneg %p124
        %s225 = sand.u32 %s114, 1
        %s226 = scalar_lea.sflag [#allocation4], %s225
        %s227 = sand.u32 %s114, 1
        %s228 = smul.addr %s227, 8
        %s229 = scalar_lea.vmem [#allocation9], %s228
        %s230 = smul.u32 4, %s27
        %s231 = smul.u32 4, %s27
        %v232 = vld [vmem:[%s206] ss:$4 sm:$0xf]
        %s233 = sld [smem:[#allocation2]]
        %v234 = vstv %s233
        %v235 = vmul.f32 %v232, %v234
        %s236 = scalar_lea.vmem %s206, 1 [#allocation8]
        %v237 = vld [vmem:[%s236] ss:$4 sm:$0xf]
        %s238 = sld [smem:[#allocation2 + $0x1]]
        %v239 = vstv %s238
        %v240 = vmul.f32 %v237, %v239
        %v241 = vadd.f32 %v235, %v240
        %s242 = scalar_lea.vmem %s206, 2 [#allocation8]
        %v243 = vld [vmem:[%s242] ss:$4 sm:$0xf]
        %s244 = sld [smem:[#allocation2 + $0x2]]
        %v245 = vstv %s244
        %v246 = vmul.f32 %v243, %v245
        %v247 = vadd.f32 %v241, %v246
        %s248 = scalar_lea.vmem %s206, 3 [#allocation8]
        %v249 = vld [vmem:[%s248] ss:$4 sm:$0xf]
        %s250 = sld [smem:[#allocation2 + $0x3]]
        %v251 = vstv %s250
        %v252 = vmul.f32 %v249, %v251
        %v253 = vadd.f32 %v247, %v252
        %s254 = sld [smem:[#allocation7]]
        %v255 = vstv %s254
        %v256 = vadd.f32 %v253, %v255
        %v257 = vxor.u32 %v256, 2147483648
        %v258 = vmul.f32 %v257, 1.442695
        %v259 = vpow.pop %v258
        %v260 = vadd.f32 %v259, 1.0
        %v261 = vrcp.pop %v260
        %v262 = vmul.f32 1.0, %v261
        %v263 = vlaneseq
        %vm264 = vcmp.ge.s32.totalorder %v263, 0
        %vm265 = vcmp.lt.s32.totalorder %v263, 512
        %vm266 = vmand %vm264, %vm265
        %267 = vst.msk [vmem:[%s229] ss:$2 sm:$0xf] %vm266, %v262
        %v268 = vld [vmem:[%s206] ss:$4 sm:$0xf]
        %s269 = sld [smem:[#allocation2 + $0x80]]
        %v270 = vstv %s269
        %v271 = vmul.f32 %v268, %v270
        %v272 = vld [vmem:[%s236] ss:$4 sm:$0xf]
        %s273 = sld [smem:[#allocation2 + $0x81]]
        %v274 = vstv %s273
        %v275 = vmul.f32 %v272, %v274
        %v276 = vadd.f32 %v271, %v275
        %v277 = vld [vmem:[%s242] ss:$4 sm:$0xf]
        %s278 = sld [smem:[#allocation2 + $0x82]]
        %v279 = vstv %s278
        %v280 = vmul.f32 %v277, %v279
        %v281 = vadd.f32 %v276, %v280
        %v282 = vld [vmem:[%s248] ss:$4 sm:$0xf]
        %s283 = sld [smem:[#allocation2 + $0x83]]
        %v284 = vstv %s283
        %v285 = vmul.f32 %v282, %v284
        %v286 = vadd.f32 %v281, %v285
        %s287 = sld [smem:[#allocation7 + $0x1]]
        %v288 = vstv %s287
        %v289 = vadd.f32 %v286, %v288
        %v290 = vxor.u32 %v289, 2147483648
        %v291 = vmul.f32 %v290, 1.442695
        %v292 = vpow.pop %v291
        %v293 = vadd.f32 %v292, 1.0
        %v294 = vrcp.pop %v293
        %v295 = vmul.f32 1.0, %v294
        %s296 = scalar_lea.vmem %s229, 1 [#allocation9]
        %297 = vst.msk [vmem:[%s296] ss:$2 sm:$0xf] %vm266, %v295
        %s298 = sand.u32 %s114, 1
        %s299 = scalar_lea.sflag [#allocation4], %s298
        %s300 = sand.u32 %s114, 1
        %s301 = smul.addr %s300, 8
        %s302 = scalar_lea.vmem [#allocation9], %s301
        // Predicated region
        $region45: #{tpu_custom_call.1} parent=31 // pred_check
          %p303 = pneg %p124
        $region46: #{tpu_custom_call.1} parent=31 // pred_check_branch
          %305 = sbr.rel (%p303) target = $region48
        $region47: #{tpu_custom_call.1} parent=31 // pred_region
          %s306 = smul.u32 4, %s27
          %s308 = ssub.s32 128, 128
          %309 = vsyncadd %s299, %s308
          %s310 = smul.addr %s26, 4
          %s311 = sadd.s32 %s306, %s310
          %s312 = smul.addr %s311, 32
          %s313 = scalar_lea.hbm %s3, %s312
          %s315 = sshll.u32 %s302, 4
          %s316 = int_to_ptr.vmem [resolvable:$true] %s315
          %318 = dma.vmem_to_hbm [thread:$0]  %s316, 128, %s313, %s299
        $region48: #{tpu_custom_call.1} parent=31 // pred_fallthru
          _
      $region32: #{tpu_custom_call.1} parent=5 // pred_fallthru
        _
      %p319 = scmp.le.s32.totalorder 2, %s17
      // Predicated region
      $region49: #{tpu_custom_call.1} parent=5 // pred_check
        %p320 = pneg %p319
      $region50: #{tpu_custom_call.1} parent=5 // pred_check_branch
        %322 = sbr.rel (%p320) target = $region52
      $region51: #{tpu_custom_call.1} parent=5 // pred_region
        %s323 = ssub.s32 %s17, 2
        // Predicated region
        $region53: #{tpu_custom_call.1} parent=51 // pred_check
          %p324 = pneg %p130
        $region54: #{tpu_custom_call.1} parent=51 // pred_check_branch
          %326 = sbr.rel (%p324) target = $region56
        $region55: #{tpu_custom_call.1} parent=51 // pred_region
          %s327 = sand.u32 %s115, 1
          %s328 = scalar_lea.sflag [#allocation4], %s327
          %s329 = sand.u32 %s115, 1
          %s330 = smul.addr %s329, 8
          %s331 = scalar_lea.vmem [#allocation9], %s330
          %332 = dma.done %s328, 128
        $region56: #{tpu_custom_call.1} parent=51 // pred_fallthru
          _
      $region52: #{tpu_custom_call.1} parent=5 // pred_fallthru
        _
    $region6: #{tpu_custom_call.1} parent=1 // loop_footer
      %s21 = sadd.s32 1, %s17
    $region7: #{tpu_custom_call.1} parent=1 // loop_footer_branch
      %16 = sbr.rel target = $region3
    $region8: #{tpu_custom_call.1} parent=1 // loop_exit
      _
    %333 = vsyncpa [#allocation3], 1
    %s334 = scalar_lea.sflag [#allocation3], 1
    %335 = vsyncpa %s334, 1
    %336 = vsyncpa [#allocation4], 1
    %s337 = scalar_lea.sflag [#allocation4], 1
    %338 = vsyncpa %s337, 1
    %339 = vsyncpa [#allocation5], 1
    %s340 = scalar_lea.sflag [#allocation5], 1
    %341 = vsyncpa %s340, 1
    %342 = vsyncpa [#allocation6], 1
    %s343 = scalar_lea.sflag [#allocation6], 1
    %344 = vsyncpa %s343, 1

</llo_original>
